<compile_context>
chip_gen: v5e
topology: v5e:2x2
jax: 0.10.0
libtpu: 0.0.40
codegen_flags: <defaults>
</compile_context>

<pallas_src>
import functools

import jax
import jax.numpy as jnp
from jax.experimental import pallas as pl
from jax.experimental.pallas import tpu as pltpu


def _round_up(x, m):
    return ((x + m - 1) // m) * m


def _ffn_partial_sum_kernel(x_ref, bid_ref, w1_ref, b1_ref, o_ref,
                            *, total_rows, b_pad, compute_dtype, mask_tail):
    """One grid step: h = relu(x@W1+b1) for a tile of flat tokens, then
    per-batch masked partial sums of h via a skinny one-hot matmul.

    x_ref  : (tile_m, C)       flat tokens (row r = t*B + b)
    bid_ref: (1, tile_m)       int32 batch id per row, or b_pad for invalid rows
    w1_ref : (C, H_pad)        fc1 weight (padded lanes zero), resident
    b1_ref : (1, H_pad)        fc1 bias  (padded lanes zero), resident
    o_ref  : (1, B_pad, H_pad) per-tile partial masked sums of h (float32)
    """
    tile_m = x_ref.shape[0]
    x = x_ref[...]

    if mask_tail:
        # The last tile can overhang the token array; overhang rows hold
        # garbage.  The scatter gives them zero weight, but 0*NaN is still
        # NaN on the MXU, so zero the (cheap, C-lane-wide) x rows.
        row = (pl.program_id(0) * tile_m
               + jax.lax.broadcasted_iota(jnp.int32, (tile_m, 1), 0))
        x = jnp.where(row < total_rows, x, 0.0)

    x = x.astype(compute_dtype)
    h = jnp.dot(x, w1_ref[...], preferred_element_type=jnp.float32)       # MXU, f32 acc
    h = jnp.maximum(h + b1_ref[...], 0.0).astype(compute_dtype)           # (tile_m, H_pad)

    # Build the (B_pad, tile_m) one-hot*validity scatter in-kernel (VPU only):
    # rows whose batch id equals the sentinel b_pad match no output row.
    out_row = jax.lax.broadcasted_iota(jnp.int32, (b_pad, tile_m), 0)
    scatter = (out_row == bid_ref[...]).astype(compute_dtype)             # (B_pad, tile_m)

    # Skinny matmul contracting over the big token dim: ~B_pad/H_pad of fc1's
    # MXU work.  bf16 operands (prod), f32 accumulation, lane-dense store.
    o_ref[0] = jnp.dot(scatter, h, preferred_element_type=jnp.float32)


def ffn_decoder_classifier(x_tbc, padding_mask, w1, b1, w2, b2,
                           *, tile_m=2048, compute_dtype=jnp.bfloat16):
    """x_tbc: (T, B, C); padding_mask: (B, T) bool (True = pad) or None.

    w1: (C, 2C) (fc1.weight^T), b1: (2C,), w2: (2C, O) (fc2.weight^T), b2: (O,)
    Returns (B, O) float32 masked-mean logits.

    compute_dtype=float32 is a validation-only path: f32xf32 matmuls lower to
    multi-pass MXU ops (3-6x slower).  Production should use bfloat16.
    """
    T, B, C = x_tbc.shape
    H = w1.shape[1]
    O = w2.shape[1]
    TB = T * B

    # ---- tile geometry -----------------------------------------------------
    tb_aligned = _round_up(TB, 8)
    if tb_aligned <= tile_m and TB < 4096:
        # Small input: one full-extent tile, no per-step overhead.
        tile_m = tb_aligned
    else:
        # Lane-aligned tiles; keep >= 2 grid steps so v7x's two TensorCores
        # both get work (the tile axis is "parallel").
        tile_m = _round_up(max(128, min(tile_m, pl.cdiv(TB, 2))), 128)
    num_tiles = pl.cdiv(TB, tile_m)
    M_pad = num_tiles * tile_m
    B_pad = max(8, _round_up(B, 8))            # sublane-aligned output rows
    H_pad = max(128, _round_up(H, 128))        # lane-dense output stores

    # ---- cheap wrapper prep (no activation-sized copies, no transpose) -----
    x_flat = x_tbc.reshape(TB, C)              # free reshape of (T, B, C)

    row_b = jnp.arange(TB, dtype=jnp.int32) % B          # batch id of flat row t*B+b
    if padding_mask is not None:
        valid_flat = jnp.logical_not(padding_mask).T.reshape(TB)
        row_b = jnp.where(valid_flat, row_b, B_pad)       # sentinel -> zero weight
        counts = (T - jnp.sum(padding_mask, axis=1)).astype(jnp.float32)
    else:
        counts = jnp.full((B,), float(T), dtype=jnp.float32)
    bid = jnp.pad(row_b, (0, M_pad - TB), constant_values=B_pad).reshape(1, M_pad)
    inv_counts = 1.0 / jnp.maximum(counts, 1.0)            # guard all-pad rows

    w1c = jnp.pad(w1, ((0, 0), (0, H_pad - H))).astype(compute_dtype)        # (C, H_pad)
    b1c = jnp.pad(b1.reshape(1, H), ((0, 0), (0, H_pad - H))).astype(jnp.float32)

    kernel = functools.partial(
        _ffn_partial_sum_kernel,
        total_rows=TB, b_pad=B_pad, compute_dtype=compute_dtype,
        mask_tail=(M_pad != TB))

    partials = pl.pallas_call(
        kernel,
        out_shape=jax.ShapeDtypeStruct((num_tiles, B_pad, H_pad), jnp.float32),
        grid_spec=pltpu.PrefetchScalarGridSpec(
            num_scalar_prefetch=0,
            grid=(num_tiles,),
            in_specs=[
                pl.BlockSpec((tile_m, C), lambda i: (i, 0)),      # tokens
                pl.BlockSpec((1, tile_m), lambda i: (0, i)),      # batch ids
                pl.BlockSpec((C, H_pad), lambda i: (0, 0)),       # w1 (resident)
                pl.BlockSpec((1, H_pad), lambda i: (0, 0)),       # b1 (resident)
            ],
            out_specs=pl.BlockSpec((1, B_pad, H_pad), lambda i: (i, 0, 0)),
        ),
        compiler_params=pltpu.CompilerParams(
            dimension_semantics=("parallel",)),   # tiles independent -> v7x 2-TC sharding
    )(x_flat, bid, w1c, b1c)

    # Tiny XLA epilogue: reduce per-tile partial sums, normalize by valid
    # counts, then apply the hoisted affine fc2 once on the (B, H) means.
    h_mean = jnp.sum(partials, axis=0)[:B, :H] * inv_counts[:, None]
    return jnp.dot(h_mean, w2.astype(jnp.float32)) + b2.astype(jnp.float32)


def _reference(x_tbc, padding_mask, w1, b1, w2, b2):
    h = jnp.maximum(jnp.einsum("tbc,ch->tbh", x_tbc, w1) + b1, 0.0)
    y = jnp.einsum("tbh,ho->tbo", h, w2) + b2                   # (T, B, O)
    if padding_mask is None:
        return jnp.mean(y, axis=0)
    valid = jnp.logical_not(padding_mask).astype(jnp.float32).T[:, :, None]
    return jnp.sum(y * valid, axis=0) / jnp.sum(valid, axis=0)


if __name__ == "__main__":
    # Small shapes consistent with the module: encoder_embed_dim=32, output_size=4
    T, B, C, O = 8, 2, 32, 4
    H = 2 * C

    key = jax.random.PRNGKey(0)
    kx, k1, k2, k3, k4 = jax.random.split(key, 5)

    x = jax.random.normal(kx, (T, B, C), dtype=jnp.float32)
    w1 = jax.random.normal(k1, (C, H), dtype=jnp.float32) * 0.1   # fc1.weight^T
    b1 = jax.random.normal(k2, (H,), dtype=jnp.float32) * 0.1
    w2 = jax.random.normal(k3, (H, O), dtype=jnp.float32) * 0.1   # fc2.weight^T
    b2 = jax.random.normal(k4, (O,), dtype=jnp.float32) * 0.1

    # padding mask: True = pad.  Batch 0 has 2 padded steps, batch 1 none.
    padding_mask = jnp.zeros((B, T), dtype=bool).at[0, T - 2:].set(True)
    ref = _reference(x, padding_mask, w1, b1, w2, b2)

    # bf16 MXU operands, f32 accumulation (production config) -> loose tolerance.
    out_bf16 = jax.block_until_ready(
        ffn_decoder_classifier(x, padding_mask, w1, b1, w2, b2,
                               compute_dtype=jnp.bfloat16))
    assert out_bf16.shape == (B, O)
    assert jnp.allclose(out_bf16, ref, atol=3e-2, rtol=3e-2), (out_bf16, ref)

    # f32 compute path (validation only) -> tight tolerance vs. f32 reference.
    out_f32 = jax.block_until_ready(
        ffn_decoder_classifier(x, padding_mask, w1, b1, w2, b2,
                               compute_dtype=jnp.float32))
    assert jnp.allclose(out_f32, ref, atol=1e-4, rtol=1e-4), (out_f32, ref)

    # padding_mask=None branch (plain mean over T).
    out_none = jax.block_until_ready(
        ffn_decoder_classifier(x, None, w1, b1, w2, b2, compute_dtype=jnp.float32))
    ref_none = _reference(x, None, w1, b1, w2, b2)
    assert jnp.allclose(out_none, ref_none, atol=1e-4, rtol=1e-4)

    # Multi-tile case with an explicit small tile: exercises grid > 1,
    # tail-row masking, sentinel batch ids and padded lanes.
    T2, B2 = 300, 4
    kx2, _ = jax.random.split(jax.random.PRNGKey(1))
    x2 = jax.random.normal(kx2, (T2, B2, C), dtype=jnp.float32)
    lens = jnp.array([300, 123, 17, 256])
    pm2 = jnp.arange(T2)[None, :] >= lens[:, None]               # (B2, T2), True = pad
    out2 = jax.block_until_ready(
        ffn_decoder_classifier(x2, pm2, w1, b1, w2, b2,
                               tile_m=256, compute_dtype=jnp.float32))
    ref2 = _reference(x2, pm2, w1, b1, w2, b2)
    assert jnp.allclose(out2, ref2, atol=1e-4, rtol=1e-4)

    # Larger case exercising the default (2048-row) auto-tiling with >= 2 tiles.
    T3, B3 = 520, 8
    kx3, _ = jax.random.split(jax.random.PRNGKey(2))
    x3 = jax.random.normal(kx3, (T3, B3, C), dtype=jnp.float32)
    lens3 = jnp.array([520, 400, 33, 256, 1, 519, 128, 77])
    pm3 = jnp.arange(T3)[None, :] >= lens3[:, None]
    out3 = jax.block_until_ready(
        ffn_decoder_classifier(x3, pm3, w1, b1, w2, b2, compute_dtype=jnp.float32))
    ref3 = _reference(x3, pm3, w1, b1, w2, b2)
    assert jnp.allclose(out3, ref3, atol=1e-3, rtol=1e-3)

    # TODO(synk): get_normalized_probs (softmax / log_softmax / sigmoid over the
    # (B, O) logits) is trivial post-processing left in plain JAX.
    print("KERNEL_OK")
</pallas_src>

<mosaic_0001>
module attributes {stable_mosaic.version = 11 : i64} {
  func.func @_ffn_partial_sum_kernel(%arg0: i32, %arg1: memref<16x32xf32, #tpu.memory_space<vmem>>, %arg2: memref<1x16xi32, #tpu.memory_space<vmem>>, %arg3: memref<32x128xbf16, #tpu.memory_space<vmem>>, %arg4: memref<1x128xf32, #tpu.memory_space<vmem>>, %arg5: memref<1x8x128xf32, #tpu.memory_space<vmem>>) attributes {dimension_semantics = [#tpu.dimension_semantics<parallel>], iteration_bounds = array<i64: 1>, scalar_prefetch = 0 : i64, scratch_operands = 0 : i64, tpu.core_type = #tpu.core_type<tc>, window_params = [{transform_indices = @transform_0, window_bounds = array<i64: 16, 32>}, {transform_indices = @transform_1, window_bounds = array<i64: 1, 16>}, {pipeline_mode = #tpu.pipeline_mode<synchronous>, transform_indices = @transform_2, window_bounds = array<i64: 32, 128>}, {pipeline_mode = #tpu.pipeline_mode<synchronous>, transform_indices = @transform_3, window_bounds = array<i64: 1, 128>}, {transform_indices = @transform_4, window_bounds = array<i64: 1, 8, 128>}]} {
    %c0 = arith.constant 0 : index
    %c0_0 = arith.constant 0 : index
    %0 = vector.load %arg1[%c0, %c0_0] : memref<16x32xf32, #tpu.memory_space<vmem>>, vector<16x32xf32>
    %1 = arith.truncf %0 : vector<16x32xf32> to vector<16x32xbf16>
    %c0_1 = arith.constant 0 : index
    %c0_2 = arith.constant 0 : index
    %2 = vector.load %arg3[%c0_1, %c0_2] : memref<32x128xbf16, #tpu.memory_space<vmem>>, vector<32x128xbf16>
    %cst = arith.constant dense<0.000000e+00> : vector<16x128xf32>
    %3 = tpu.matmul %1, %2, %cst {dimension_numbers = #tpu.dot_dimension_numbers<[1], [0], [0], [1], [0, 0, 1, 1], [], []>} : vector<16x32xbf16>, vector<32x128xbf16>, vector<16x128xf32> -> vector<16x128xf32>
    %c0_3 = arith.constant 0 : index
    %c0_4 = arith.constant 0 : index
    %4 = vector.load %arg4[%c0_3, %c0_4] : memref<1x128xf32, #tpu.memory_space<vmem>>, vector<1x128xf32>
    %5 = vector.broadcast %4 : vector<1x128xf32> to vector<16x128xf32>
    %6 = arith.addf %3, %5 : vector<16x128xf32>
    %cst_5 = arith.constant 0.000000e+00 : f32
    %7 = vector.broadcast %cst_5 : f32 to vector<16x128xf32>
    %8 = arith.maximumf %6, %7 : vector<16x128xf32>
    %9 = arith.truncf %8 : vector<16x128xf32> to vector<16x128xbf16>
    %10 = tpu.iota {dimensions = array<i32: 0>} : vector<8x16xi32>
    %c0_6 = arith.constant 0 : index
    %c0_7 = arith.constant 0 : index
    %11 = vector.load %arg2[%c0_6, %c0_7] : memref<1x16xi32, #tpu.memory_space<vmem>>, vector<1x16xi32>
    %12 = vector.broadcast %11 : vector<1x16xi32> to vector<8x16xi32>
    %13 = arith.cmpi eq, %10, %12 : vector<8x16xi32>
    %14 = arith.extui %13 : vector<8x16xi1> to vector<8x16xi32>
    %15 = arith.sitofp %14 : vector<8x16xi32> to vector<8x16xf32>
    %16 = arith.truncf %15 : vector<8x16xf32> to vector<8x16xbf16>
    %cst_8 = arith.constant dense<0.000000e+00> : vector<8x128xf32>
    %17 = tpu.matmul %16, %9, %cst_8 {dimension_numbers = #tpu.dot_dimension_numbers<[1], [0], [0], [1], [0, 0, 1, 1], [], []>} : vector<8x16xbf16>, vector<16x128xbf16>, vector<8x128xf32> -> vector<8x128xf32>
    %c0_9 = arith.constant 0 : index
    %c0_10 = arith.constant 0 : index
    %c0_11 = arith.constant 0 : index
    %18 = vector.load %arg5[%c0_9, %c0_10, %c0_11] : memref<1x8x128xf32, #tpu.memory_space<vmem>>, vector<1x8x128xf32>
    %19 = vector.shape_cast %18 : vector<1x8x128xf32> to vector<8x128xf32>
    %20 = vector.shape_cast %17 : vector<8x128xf32> to vector<1x8x128xf32>
    tpu.vector_store %arg5[%c0_9, %c0_10, %c0_11], %20 {strides = array<i32>} : memref<1x8x128xf32, #tpu.memory_space<vmem>>, vector<1x8x128xf32>,
    return
  }
  func.func @transform_0(%arg0: i32) -> (i32, i32) {
    %c0_i32 = arith.constant 0 : i32
    %c0_i32_0 = arith.constant 0 : i32
    return %arg0, %c0_i32 : i32, i32
  }
  func.func @transform_1(%arg0: i32) -> (i32, i32) {
    %c0_i32 = arith.constant 0 : i32
    %c0_i32_0 = arith.constant 0 : i32
    return %c0_i32, %arg0 : i32, i32
  }
  func.func @transform_2(%arg0: i32) -> (i32, i32) {
    %c0_i32 = arith.constant 0 : i32
    %c0_i32_0 = arith.constant 0 : i32
    %c0_i32_1 = arith.constant 0 : i32
    return %c0_i32, %c0_i32_0 : i32, i32
  }
  func.func @transform_3(%arg0: i32) -> (i32, i32) {
    %c0_i32 = arith.constant 0 : i32
    %c0_i32_0 = arith.constant 0 : i32
    %c0_i32_1 = arith.constant 0 : i32
    return %c0_i32, %c0_i32_0 : i32, i32
  }
  func.func @transform_4(%arg0: i32) -> (i32, i32, i32) {
    %c0_i32 = arith.constant 0 : i32
    %c0_i32_0 = arith.constant 0 : i32
    %c0_i32_1 = arith.constant 0 : i32
    return %arg0, %c0_i32, %c0_i32_0 : i32, i32, i32
  }
}

</mosaic_0001>

<llo_original>
// kernel: tpu_custom_call.1
$region0: #{tpu_custom_call.1}
  #allocation0 [shape = 'u32[]', space=smem, size = 0x4, offset = 0x4, fixed_abs, tag = 'smem constant byte address 0x4 - core index']
  #allocation1 [shape = 'u32[72,128]{1,0:T(1,128)}', space=vmem, size = 0x9000, scoped, tag = 'internal scratch']
  %s0 = inlined_call_operand.hbm [shape: f32[16,32], index: 0, kind: input, shape index: {}]
  %s1 = inlined_call_operand.hbm [shape: s32[1,16], index: 1, kind: input, shape index: {}]
  %s2 = inlined_call_operand.hbm [shape: bf16[32,128], index: 2, kind: input, shape index: {}]
  %s3 = inlined_call_operand.vmem [shape: f32[1,128], index: 3, kind: input, shape index: {}]
  %s4 = inlined_call_operand.hbm [shape: f32[1,8,128], index: 4, kind: output, shape index: {}]
  %s5 = sld [smem:[#allocation0]]
  $region38: #{tpu_custom_call.1} parent=0
    _
  %s7 = ssub.s32 1, %s5
  %s8 = scalar_select 0, %s7, %s5
  $region1: #{tpu_custom_call.1} parent=0
    #allocation2 [shape = 'u8[8192]{0}', space=vmem, size = 0x2000, scoped, tag = 'input window, operand 0, single buffered']
    #allocation3 [shape = 's32[1]{0}', space=sflag, size = 0x4, scoped, tag = 'scoped memory for tpu_custom_call.1']
    #allocation4 [shape = 's32[1]{0}', space=sflag, size = 0x4, scoped, tag = 'scoped memory for tpu_custom_call.1']
    #allocation5 [shape = 'u8[512]{0}', space=vmem, size = 0x400, scoped, tag = 'input window, operand 1, single buffered']
    #allocation6 [shape = 's32[1]{0}', space=sflag, size = 0x4, scoped, tag = 'scoped memory for tpu_custom_call.1']
    #allocation7 [shape = 'u8[8192]{0}', space=vmem, size = 0x2000, scoped, tag = 'input window, operand 2, single buffered']
    #allocation8 [shape = 'u8[4096]{0}', space=vmem, size = 0x1000, scoped, tag = 'output window, operand 0, single buffered']
    %9 = vsyncpa [#allocation3], 0
    %10 = vsyncpa [#allocation6], 0
    %11 = vsyncpa [#allocation4], 0
    // Predicated region
    $region2: #{tpu_custom_call.1} parent=1 // pred_check
      _
    $region3: #{tpu_custom_call.1} parent=1 // pred_check_branch
      %13 = sbr.rel (0) target = $region5
    $region4: #{tpu_custom_call.1} parent=1 // pred_region
      %15 = vsyncadd [#allocation3], 0
      %s16 = sshll.u32 %s0, 4
      %s17 = int_to_ptr.hbm [resolvable:$true] %s16
      %s18 = sshll.u32 [#allocation2], 4
      %s19 = int_to_ptr.vmem [resolvable:$true] %s18
      %24 = dma.hbm_to_vmem [thread:$0]  %s17, 256, %s19, [#allocation3], 128, 128, 8
    $region5: #{tpu_custom_call.1} parent=1 // pred_fallthru
      _
    // Predicated region
    $region6: #{tpu_custom_call.1} parent=1 // pred_check
      _
    $region7: #{tpu_custom_call.1} parent=1 // pred_check_branch
      %26 = sbr.rel (0) target = $region9
    $region8: #{tpu_custom_call.1} parent=1 // pred_region
      %28 = vsyncadd [#allocation6], 0
      %s30 = sshll.u32 %s1, 4
      %s31 = int_to_ptr.hbm [resolvable:$true] %s30
      %s32 = sshll.u32 [#allocation5], 4
      %s33 = int_to_ptr.vmem [resolvable:$true] %s32
      %35 = dma.hbm_to_vmem [thread:$0]  %s31, 16, %s33, [#allocation6]
    $region9: #{tpu_custom_call.1} parent=1 // pred_fallthru
      _
    // Predicated region
    $region10: #{tpu_custom_call.1} parent=1 // pred_check
      _
    $region11: #{tpu_custom_call.1} parent=1 // pred_check_branch
      %37 = sbr.rel (0) target = $region13
    $region12: #{tpu_custom_call.1} parent=1 // pred_region
      %39 = vsyncadd [#allocation6], 0
      %s40 = sshll.u32 %s2, 4
      %s41 = int_to_ptr.hbm [resolvable:$true] %s40
      %s42 = sshll.u32 [#allocation7], 4
      %s43 = int_to_ptr.vmem [resolvable:$true] %s42
      %48 = dma.hbm_to_vmem [thread:$0]  %s41, 256, %s43, [#allocation6], 64, 64, 4
    $region13: #{tpu_custom_call.1} parent=1 // pred_fallthru
      _
    // Predicated region
    $region14: #{tpu_custom_call.1} parent=1 // pred_check
      _
    $region15: #{tpu_custom_call.1} parent=1 // pred_check_branch
      %50 = sbr.rel (0) target = $region17
    $region16: #{tpu_custom_call.1} parent=1 // pred_region
      _
    $region17: #{tpu_custom_call.1} parent=1 // pred_fallthru
      _
    // Predicated region
    $region18: #{tpu_custom_call.1} parent=1 // pred_check
      _
    $region19: #{tpu_custom_call.1} parent=1 // pred_check_branch
      %52 = sbr.rel (0) target = $region21
    $region20: #{tpu_custom_call.1} parent=1 // pred_region
      %54 = dma.done [#allocation3], 256
    $region21: #{tpu_custom_call.1} parent=1 // pred_fallthru
      _
    // Predicated region
    $region22: #{tpu_custom_call.1} parent=1 // pred_check
      _
    $region23: #{tpu_custom_call.1} parent=1 // pred_check_branch
      %56 = sbr.rel (0) target = $region25
    $region24: #{tpu_custom_call.1} parent=1 // pred_region
      %58 = dma.done [#allocation6], 16
    $region25: #{tpu_custom_call.1} parent=1 // pred_fallthru
      _
    // Predicated region
    $region26: #{tpu_custom_call.1} parent=1 // pred_check
      _
    $region27: #{tpu_custom_call.1} parent=1 // pred_check_branch
      %60 = sbr.rel (0) target = $region29
    $region28: #{tpu_custom_call.1} parent=1 // pred_region
      %62 = dma.done [#allocation6], 256
    $region29: #{tpu_custom_call.1} parent=1 // pred_fallthru
      _
    %v64 = vld [vmem:[#allocation2] sm:$0xff]
    %v65 = vld [vmem:[#allocation2 + $0x8] sm:$0xff]
    %v66 = vpack.c.bf16 %v65, %v64
    %v67 = vld [vmem:[#allocation7] sm:$0xf]
    %v68 = vld [vmem:[#allocation7 + $0x4] sm:$0xf]
    %v69 = vld [vmem:[#allocation7 + $0x8] sm:$0xf]
    %v70 = vld [vmem:[#allocation7 + $0xc] sm:$0xf]
    %v71 = vld [vmem:[%s3] sm:$0x1]
    %v73 = vperm.slane %v71, 0
    %v79 = vunpack.c.l.b16 %v67
    %v80 = vunpack.c.l.b16 %v68
    %v81 = vunpack.c.l.b16 %v69
    %v82 = vunpack.c.l.b16 %v70
    %v83 = vpack.c.b16 %v80, %v79
    %v84 = vpack.c.b16 %v82, %v81
    %vm87 = vcmask 261120
    %v89 = vsel %vm87, %v66, 0
    %91 = vmatpush.bf16.msra.mxu0 0
    %92 = vmatpush.bf16.msra.mxu0 0
    %93 = vmatpush.bf16.msra.mxu0 0
    %94 = vmatpush.bf16.msra.mxu0 0
    %95 = vmatpush.bf16.msra.mxu0 0
    %96 = vmatpush.bf16.msra.mxu0 0
    %97 = vmatpush.bf16.msra.mxu0 %v84
    %98 = vmatpush.bf16.msra.mxu0 %v83
    %99 = vmatmul.bf16.gmra.mxu0 %v89
    %v100 = vpop.f32.mrf.mxu0
    %v101 = vadd.f32 %v73, %v100
    %v102 = vpop.f32.mrf.mxu0
    %v103 = vadd.f32 %v73, %v102
    %104 = vdwg.mxu0
    %v105 = vmax.f32 %v101, 0.0
    %v106 = vmax.f32 %v103, 0.0
    %v107 = vpack.c.bf16 %v106, %v105
    %v108 = vlaneseq
    %v109 = vshrl.u32 %v108, 7
    %v110 = vld [vmem:[#allocation5] sm:$0x1]
    %v111 = vperm.slane %v110, 0
    %vm112 = vcmp.eq.s32.totalorder %v109, %v111
    %v113 = vsel %vm112, 1, 0
    %v114 = vcvt.s32.f32 %v113
    %v115 = vpack.c.bf16 %v114, %v114
    %vm116 = vcmask 130048
    %v118 = vsel %vm116, %v115, 0
    %120 = vmatpush.bf16.msra.mxu0 0
    %121 = vmatpush.bf16.msra.mxu0 0
    %122 = vmatpush.bf16.msra.mxu0 0
    %123 = vmatpush.bf16.msra.mxu0 0
    %124 = vmatpush.bf16.msra.mxu0 0
    %125 = vmatpush.bf16.msra.mxu0 0
    %126 = vmatpush.bf16.msra.mxu0 0
    %127 = vmatpush.bf16.msra.mxu0 %v107
    %128 = vmatmul.bf16.gmra.mxu0 %v118
    %v129 = vpop.f32.mrf.mxu0
    %v130 = vadd.f32 0.0, %v129
    %v131 = vpop.f32.mrf.mxu0
    %132 = vdwg.mxu0
    %133 = vst [vmem:[#allocation8] sm:$0xff] %v130
    // Predicated region
    $region30: #{tpu_custom_call.1} parent=1 // pred_check
      _
    $region31: #{tpu_custom_call.1} parent=1 // pred_check_branch
      %135 = sbr.rel (0) target = $region33
    $region32: #{tpu_custom_call.1} parent=1 // pred_region
      %137 = vsyncadd [#allocation4], 0
      %s139 = sshll.u32 [#allocation8], 4
      %s140 = int_to_ptr.vmem [resolvable:$true] %s139
      %s141 = sshll.u32 %s4, 4
      %s142 = int_to_ptr.hbm [resolvable:$true] %s141
      %144 = dma.vmem_to_hbm [thread:$0]  %s140, 128, %s142, [#allocation4]
    $region33: #{tpu_custom_call.1} parent=1 // pred_fallthru
      _
    // Predicated region
    $region34: #{tpu_custom_call.1} parent=1 // pred_check
      _
    $region35: #{tpu_custom_call.1} parent=1 // pred_check_branch
      %146 = sbr.rel (0) target = $region37
    $region36: #{tpu_custom_call.1} parent=1 // pred_region
      %148 = dma.done [#allocation4], 128
    $region37: #{tpu_custom_call.1} parent=1 // pred_fallthru
      _
    %149 = vsyncpa [#allocation3], 1
    %150 = vsyncpa [#allocation6], 1
    %151 = vsyncpa [#allocation4], 1

</llo_original>
